<compile_context>
chip_gen: v5e
topology: v5e:2x2
jax: 0.10.0
libtpu: 0.0.40
codegen_flags: <defaults>
</compile_context>

<pallas_src>
import math
from functools import partial

import jax
import jax.numpy as jnp
from jax import lax
from jax.experimental import pallas as pl
from jax.experimental.pallas import tpu as pltpu

NUM_HEADS = 2


def mha_kernel(q_ref, k_ref, v_ref, w_in_ref, b_in_ref, wo_ref, bo_ref, o_ref,
               *, num_heads, mxu_dtype):
    """One grid step == one batch element's full multi-head attention."""
    q = q_ref[0]            # (L, E)  f32
    k = k_ref[0]            # (S, E)
    v = v_ref[0]            # (S, E)
    w_in_t = w_in_ref[...]  # (E, 3E)  pre-transposed: x @ w_in_t
    b_in = b_in_ref[...]    # (1, 3E)
    wo_t = wo_ref[...]      # (E, E)   pre-transposed
    bo = bo_ref[...]        # (1, E)

    e = q.shape[-1]
    hd = e // num_heads
    scale = 1.0 / math.sqrt(hd)

    def mxu(x):
        # MXU operand dtype (bf16 on request); accumulation stays f32.
        return x.astype(mxu_dtype)

    # Fused input projections: one (rows, E) @ (E, E) matmul per stream.
    # Column slices of the packed (E, 3E) weight stay within 128-lane tiles.
    qp = jnp.dot(mxu(q), mxu(w_in_t[:, :e]),
                 preferred_element_type=jnp.float32) + b_in[:, :e]
    kp = jnp.dot(mxu(k), mxu(w_in_t[:, e:2 * e]),
                 preferred_element_type=jnp.float32) + b_in[:, e:2 * e]
    vp = jnp.dot(mxu(v), mxu(w_in_t[:, 2 * e:]),
                 preferred_element_type=jnp.float32) + b_in[:, 2 * e:]

    heads = []
    for h in range(num_heads):           # static unroll (2 heads)
        qh = qp[:, h * hd:(h + 1) * hd]  # (L, hd) -- 16-lane in-vreg slice
        kh = kp[:, h * hd:(h + 1) * hd]
        vh = vp[:, h * hd:(h + 1) * hd]

        # Q @ K^T without materializing K^T: contract last axes of both.
        s = lax.dot_general(mxu(qh), mxu(kh), (((1,), (1,)), ((), ())),
                            preferred_element_type=jnp.float32) * scale

        # Max-stabilized softmax, all-f32 vector math (no bf16 VPU/EUP on v5e).
        m = jnp.max(s, axis=-1, keepdims=True)
        p = jnp.exp(s - m)
        denom = jnp.sum(p, axis=-1, keepdims=True)
        inv = pl.reciprocal(denom, approx=True)     # EUP
        inv = inv * (2.0 - denom * inv)             # one Newton step -> ~fp32
        attn = p * inv

        heads.append(jnp.dot(mxu(attn), mxu(vh),
                             preferred_element_type=jnp.float32))  # (L, hd)

    # Lane-concat (2 x 16 lanes within one 128-lane vreg) + single output proj.
    ctx = jnp.concatenate(heads, axis=-1)                          # (L, E)
    out = jnp.dot(mxu(ctx), mxu(wo_t),
                  preferred_element_type=jnp.float32) + bo
    o_ref[0] = out.astype(o_ref.dtype)


def cross_attention_layer(query, key, value, params, num_heads=NUM_HEADS,
                          mxu_dtype=jnp.float32):
    """query: (L, N, E); key/value: (S, N, E). Returns (L, N, E)."""
    L, N, E = query.shape
    S = key.shape[0]
    assert E % num_heads == 0

    # Batch-major layout so N is a clean "parallel" grid axis.
    q_nle = jnp.transpose(query, (1, 0, 2))   # (N, L, E)
    k_nse = jnp.transpose(key, (1, 0, 2))     # (N, S, E)
    v_nse = jnp.transpose(value, (1, 0, 2))   # (N, S, E)

    # Packed, pre-transposed weights: 4 resident operands instead of 9.
    w_in_t = params["in_proj_weight"].T             # (E, 3E): x @ w_in_t
    b_in = params["in_proj_bias"].reshape(1, 3 * E)
    wo_t = params["out_proj_weight"].T              # (E, E)
    bo = params["out_proj_bias"].reshape(1, E)

    vmem = pltpu.MemorySpace.VMEM
    kernel = partial(mha_kernel, num_heads=num_heads, mxu_dtype=mxu_dtype)

    out_nle = pl.pallas_call(
        kernel,
        out_shape=jax.ShapeDtypeStruct((N, L, E), query.dtype),
        grid=(N,),
        in_specs=[
            pl.BlockSpec((1, L, E), lambda n: (n, 0, 0), memory_space=vmem),
            pl.BlockSpec((1, S, E), lambda n: (n, 0, 0), memory_space=vmem),
            pl.BlockSpec((1, S, E), lambda n: (n, 0, 0), memory_space=vmem),
            # Weights: constant block index -> not re-fetched across grid steps.
            pl.BlockSpec((E, 3 * E), lambda n: (0, 0), memory_space=vmem),
            pl.BlockSpec((1, 3 * E), lambda n: (0, 0), memory_space=vmem),
            pl.BlockSpec((E, E), lambda n: (0, 0), memory_space=vmem),
            pl.BlockSpec((1, E), lambda n: (0, 0), memory_space=vmem),
        ],
        out_specs=pl.BlockSpec((1, L, E), lambda n: (n, 0, 0),
                               memory_space=vmem),
        compiler_params=pltpu.CompilerParams(
            dimension_semantics=("parallel",)),
    )(q_nle, k_nse, v_nse, w_in_t, b_in, wo_t, bo)

    return jnp.transpose(out_nle, (1, 0, 2))        # back to (L, N, E)


def init_params(key, d_model):
    """Deterministic synthetic init (shapes match nn.MultiheadAttention)."""
    k1, k2 = jax.random.split(key)
    xavier_in = math.sqrt(6.0 / (3 * d_model + d_model))
    xavier_out = math.sqrt(6.0 / (2 * d_model))
    return {
        "in_proj_weight": jax.random.uniform(
            k1, (3 * d_model, d_model), jnp.float32, -xavier_in, xavier_in),
        "in_proj_bias": jnp.zeros((3 * d_model,), jnp.float32),
        "out_proj_weight": jax.random.uniform(
            k2, (d_model, d_model), jnp.float32, -xavier_out, xavier_out),
        "out_proj_bias": jnp.zeros((d_model,), jnp.float32),
    }


def reference(query, key, value, params):
    """Pure-JAX reference identical to nn.MultiheadAttention eval forward."""
    L, N, E = query.shape
    hd = E // NUM_HEADS
    w_in, b_in = params["in_proj_weight"], params["in_proj_bias"]
    Q = query @ w_in[:E].T + b_in[:E]
    K = key @ w_in[E:2 * E].T + b_in[E:2 * E]
    V = value @ w_in[2 * E:].T + b_in[2 * E:]

    def split(x):  # (T, N, E) -> (N, H, T, hd)
        T = x.shape[0]
        return jnp.transpose(x.reshape(T, N, NUM_HEADS, hd), (1, 2, 0, 3))

    Qh, Kh, Vh = split(Q), split(K), split(V)
    s = jnp.einsum("nhqd,nhkd->nhqk", Qh, Kh) / math.sqrt(hd)
    p = jax.nn.softmax(s, axis=-1)
    o = jnp.einsum("nhqk,nhkd->nhqd", p, Vh)          # (N, H, L, hd)
    o = jnp.transpose(o, (2, 0, 1, 3)).reshape(L, N, E)
    return o @ params["out_proj_weight"].T + params["out_proj_bias"]


if __name__ == "__main__":
    d_model = 32
    L, S, N = 8, 8, 2

    key = jax.random.PRNGKey(0)
    kq, kk, kv, kp = jax.random.split(key, 4)
    query = jax.random.normal(kq, (L, N, d_model), jnp.float32)
    key_in = jax.random.normal(kk, (S, N, d_model), jnp.float32)
    value = jax.random.normal(kv, (S, N, d_model), jnp.float32)
    params = init_params(kp, d_model)

    ref = reference(query, key_in, value, params)

    # Default path: f32 MXU operands, exact parity with the PyTorch reference.
    out = cross_attention_layer(query, key_in, value, params)
    out = jax.block_until_ready(out)
    assert out.shape == (L, N, d_model)
    max_err = float(jnp.max(jnp.abs(out - ref)))
    assert jnp.allclose(out, ref, atol=2e-4, rtol=2e-4), \
        f"f32 path mismatch vs reference (max abs err {max_err})"

    # bf16-MXU / f32-accumulate path (v5e/v6e/v7x MXU-native), looser check.
    out_bf16 = cross_attention_layer(query, key_in, value, params,
                                     mxu_dtype=jnp.bfloat16)
    out_bf16 = jax.block_until_ready(out_bf16)
    max_err_bf16 = float(jnp.max(jnp.abs(out_bf16 - ref)))
    assert jnp.allclose(out_bf16, ref, atol=1e-1, rtol=1e-1), \
        f"bf16-MXU path mismatch vs reference (max abs err {max_err_bf16})"

    print("KERNEL_OK")
</pallas_src>

<mosaic_0001>
module attributes {stable_mosaic.version = 11 : i64} {
  func.func @mha_kernel(%arg0: i32, %arg1: memref<1x8x32xf32, #tpu.memory_space<vmem>>, %arg2: memref<1x8x32xf32, #tpu.memory_space<vmem>>, %arg3: memref<1x8x32xf32, #tpu.memory_space<vmem>>, %arg4: memref<32x96xf32, #tpu.memory_space<vmem>>, %arg5: memref<1x96xf32, #tpu.memory_space<vmem>>, %arg6: memref<32x32xf32, #tpu.memory_space<vmem>>, %arg7: memref<1x32xf32, #tpu.memory_space<vmem>>, %arg8: memref<1x8x32xf32, #tpu.memory_space<vmem>>) attributes {dimension_semantics = [#tpu.dimension_semantics<parallel>], iteration_bounds = array<i64: 2>, scalar_prefetch = 0 : i64, scratch_operands = 0 : i64, tpu.core_type = #tpu.core_type<tc>, window_params = [{transform_indices = @transform_0, window_bounds = array<i64: 1, 8, 32>}, {transform_indices = @transform_1, window_bounds = array<i64: 1, 8, 32>}, {transform_indices = @transform_2, window_bounds = array<i64: 1, 8, 32>}, {pipeline_mode = #tpu.pipeline_mode<synchronous>, transform_indices = @transform_3, window_bounds = array<i64: 32, 96>}, {pipeline_mode = #tpu.pipeline_mode<synchronous>, transform_indices = @transform_4, window_bounds = array<i64: 1, 96>}, {pipeline_mode = #tpu.pipeline_mode<synchronous>, transform_indices = @transform_5, window_bounds = array<i64: 32, 32>}, {pipeline_mode = #tpu.pipeline_mode<synchronous>, transform_indices = @transform_6, window_bounds = array<i64: 1, 32>}, {transform_indices = @transform_7, window_bounds = array<i64: 1, 8, 32>}]} {
    %c0 = arith.constant 0 : index
    %c0_0 = arith.constant 0 : index
    %c0_1 = arith.constant 0 : index
    %0 = vector.load %arg1[%c0, %c0_0, %c0_1] : memref<1x8x32xf32, #tpu.memory_space<vmem>>, vector<1x8x32xf32>
    %1 = vector.shape_cast %0 : vector<1x8x32xf32> to vector<8x32xf32>
    %c0_2 = arith.constant 0 : index
    %c0_3 = arith.constant 0 : index
    %c0_4 = arith.constant 0 : index
    %2 = vector.load %arg2[%c0_2, %c0_3, %c0_4] : memref<1x8x32xf32, #tpu.memory_space<vmem>>, vector<1x8x32xf32>
    %3 = vector.shape_cast %2 : vector<1x8x32xf32> to vector<8x32xf32>
    %c0_5 = arith.constant 0 : index
    %c0_6 = arith.constant 0 : index
    %c0_7 = arith.constant 0 : index
    %4 = vector.load %arg3[%c0_5, %c0_6, %c0_7] : memref<1x8x32xf32, #tpu.memory_space<vmem>>, vector<1x8x32xf32>
    %5 = vector.shape_cast %4 : vector<1x8x32xf32> to vector<8x32xf32>
    %c0_8 = arith.constant 0 : index
    %c0_9 = arith.constant 0 : index
    %6 = vector.load %arg4[%c0_8, %c0_9] : memref<32x96xf32, #tpu.memory_space<vmem>>, vector<32x96xf32>
    %c0_10 = arith.constant 0 : index
    %c0_11 = arith.constant 0 : index
    %7 = vector.load %arg5[%c0_10, %c0_11] : memref<1x96xf32, #tpu.memory_space<vmem>>, vector<1x96xf32>
    %c0_12 = arith.constant 0 : index
    %c0_13 = arith.constant 0 : index
    %8 = vector.load %arg6[%c0_12, %c0_13] : memref<32x32xf32, #tpu.memory_space<vmem>>, vector<32x32xf32>
    %c0_14 = arith.constant 0 : index
    %c0_15 = arith.constant 0 : index
    %9 = vector.load %arg7[%c0_14, %c0_15] : memref<1x32xf32, #tpu.memory_space<vmem>>, vector<1x32xf32>
    %10 = vector.extract_strided_slice %6 {offsets = [0, 0], sizes = [32, 32], strides = [1, 1]} : vector<32x96xf32> to vector<32x32xf32>
    %cst = arith.constant dense<0.000000e+00> : vector<8x32xf32>
    %11 = tpu.matmul %1, %10, %cst {dimension_numbers = #tpu.dot_dimension_numbers<[1], [0], [0], [1], [0, 0, 1, 1], [], []>} : vector<8x32xf32>, vector<32x32xf32>, vector<8x32xf32> -> vector<8x32xf32>
    %12 = vector.extract_strided_slice %7 {offsets = [0, 0], sizes = [1, 32], strides = [1, 1]} : vector<1x96xf32> to vector<1x32xf32>
    %13 = vector.broadcast %12 : vector<1x32xf32> to vector<8x32xf32>
    %14 = arith.addf %11, %13 : vector<8x32xf32>
    %15 = vector.extract_strided_slice %6 {offsets = [0, 32], sizes = [32, 32], strides = [1, 1]} : vector<32x96xf32> to vector<32x32xf32>
    %cst_16 = arith.constant dense<0.000000e+00> : vector<8x32xf32>
    %16 = tpu.matmul %3, %15, %cst_16 {dimension_numbers = #tpu.dot_dimension_numbers<[1], [0], [0], [1], [0, 0, 1, 1], [], []>} : vector<8x32xf32>, vector<32x32xf32>, vector<8x32xf32> -> vector<8x32xf32>
    %17 = vector.extract_strided_slice %7 {offsets = [0, 32], sizes = [1, 32], strides = [1, 1]} : vector<1x96xf32> to vector<1x32xf32>
    %18 = vector.broadcast %17 : vector<1x32xf32> to vector<8x32xf32>
    %19 = arith.addf %16, %18 : vector<8x32xf32>
    %20 = vector.extract_strided_slice %6 {offsets = [0, 64], sizes = [32, 32], strides = [1, 1]} : vector<32x96xf32> to vector<32x32xf32>
    %cst_17 = arith.constant dense<0.000000e+00> : vector<8x32xf32>
    %21 = tpu.matmul %5, %20, %cst_17 {dimension_numbers = #tpu.dot_dimension_numbers<[1], [0], [0], [1], [0, 0, 1, 1], [], []>} : vector<8x32xf32>, vector<32x32xf32>, vector<8x32xf32> -> vector<8x32xf32>
    %22 = vector.extract_strided_slice %7 {offsets = [0, 64], sizes = [1, 32], strides = [1, 1]} : vector<1x96xf32> to vector<1x32xf32>
    %23 = vector.broadcast %22 : vector<1x32xf32> to vector<8x32xf32>
    %24 = arith.addf %21, %23 : vector<8x32xf32>
    %25 = vector.extract_strided_slice %14 {offsets = [0, 0], sizes = [8, 16], strides = [1, 1]} : vector<8x32xf32> to vector<8x16xf32>
    %26 = vector.extract_strided_slice %19 {offsets = [0, 0], sizes = [8, 16], strides = [1, 1]} : vector<8x32xf32> to vector<8x16xf32>
    %27 = vector.extract_strided_slice %24 {offsets = [0, 0], sizes = [8, 16], strides = [1, 1]} : vector<8x32xf32> to vector<8x16xf32>
    %cst_18 = arith.constant dense<0.000000e+00> : vector<8x8xf32>
    %28 = tpu.matmul %25, %26, %cst_18 {dimension_numbers = #tpu.dot_dimension_numbers<[1], [1], [0], [0], [0, 0, 1, 0], [], []>} : vector<8x16xf32>, vector<8x16xf32>, vector<8x8xf32> -> vector<8x8xf32>
    %cst_19 = arith.constant 2.500000e-01 : f32
    %29 = vector.broadcast %cst_19 : f32 to vector<8x8xf32>
    %30 = arith.mulf %28, %29 : vector<8x8xf32>
    %cst_20 = arith.constant dense<0xFF800000> : vector<8xf32>
    %31 = vector.multi_reduction <maximumf>, %30, %cst_20 [1] : vector<8x8xf32> to vector<8xf32>
    %32 = vector.shape_cast %31 : vector<8xf32> to vector<8x1xf32>
    %33 = vector.broadcast %32 : vector<8x1xf32> to vector<8x8xf32>
    %34 = arith.subf %30, %33 : vector<8x8xf32>
    %35 = math.exp %34 : vector<8x8xf32>
    %cst_21 = arith.constant dense<0.000000e+00> : vector<8xf32>
    %36 = vector.multi_reduction <add>, %35, %cst_21 [1] : vector<8x8xf32> to vector<8xf32>
    %37 = vector.shape_cast %36 : vector<8xf32> to vector<8x1xf32>
    %38 = tpu.reciprocal %37 {approx = true} : vector<8x1xf32> -> vector<8x1xf32>
    %39 = arith.mulf %37, %38 : vector<8x1xf32>
    %cst_22 = arith.constant 2.000000e+00 : f32
    %40 = vector.broadcast %cst_22 : f32 to vector<8x1xf32>
    %41 = arith.subf %40, %39 : vector<8x1xf32>
    %42 = arith.mulf %38, %41 : vector<8x1xf32>
    %43 = vector.broadcast %42 : vector<8x1xf32> to vector<8x8xf32>
    %44 = arith.mulf %35, %43 : vector<8x8xf32>
    %cst_23 = arith.constant dense<0.000000e+00> : vector<8x16xf32>
    %45 = tpu.matmul %44, %27, %cst_23 {dimension_numbers = #tpu.dot_dimension_numbers<[1], [0], [0], [1], [0, 0, 1, 1], [], []>} : vector<8x8xf32>, vector<8x16xf32>, vector<8x16xf32> -> vector<8x16xf32>
    %46 = vector.extract_strided_slice %14 {offsets = [0, 16], sizes = [8, 16], strides = [1, 1]} : vector<8x32xf32> to vector<8x16xf32>
    %47 = vector.extract_strided_slice %19 {offsets = [0, 16], sizes = [8, 16], strides = [1, 1]} : vector<8x32xf32> to vector<8x16xf32>
    %48 = vector.extract_strided_slice %24 {offsets = [0, 16], sizes = [8, 16], strides = [1, 1]} : vector<8x32xf32> to vector<8x16xf32>
    %cst_24 = arith.constant dense<0.000000e+00> : vector<8x8xf32>
    %49 = tpu.matmul %46, %47, %cst_24 {dimension_numbers = #tpu.dot_dimension_numbers<[1], [1], [0], [0], [0, 0, 1, 0], [], []>} : vector<8x16xf32>, vector<8x16xf32>, vector<8x8xf32> -> vector<8x8xf32>
    %cst_25 = arith.constant 2.500000e-01 : f32
    %50 = vector.broadcast %cst_25 : f32 to vector<8x8xf32>
    %51 = arith.mulf %49, %50 : vector<8x8xf32>
    %cst_26 = arith.constant dense<0xFF800000> : vector<8xf32>
    %52 = vector.multi_reduction <maximumf>, %51, %cst_26 [1] : vector<8x8xf32> to vector<8xf32>
    %53 = vector.shape_cast %52 : vector<8xf32> to vector<8x1xf32>
    %54 = vector.broadcast %53 : vector<8x1xf32> to vector<8x8xf32>
    %55 = arith.subf %51, %54 : vector<8x8xf32>
    %56 = math.exp %55 : vector<8x8xf32>
    %cst_27 = arith.constant dense<0.000000e+00> : vector<8xf32>
    %57 = vector.multi_reduction <add>, %56, %cst_27 [1] : vector<8x8xf32> to vector<8xf32>
    %58 = vector.shape_cast %57 : vector<8xf32> to vector<8x1xf32>
    %59 = tpu.reciprocal %58 {approx = true} : vector<8x1xf32> -> vector<8x1xf32>
    %60 = arith.mulf %58, %59 : vector<8x1xf32>
    %cst_28 = arith.constant 2.000000e+00 : f32
    %61 = vector.broadcast %cst_28 : f32 to vector<8x1xf32>
    %62 = arith.subf %61, %60 : vector<8x1xf32>
    %63 = arith.mulf %59, %62 : vector<8x1xf32>
    %64 = vector.broadcast %63 : vector<8x1xf32> to vector<8x8xf32>
    %65 = arith.mulf %56, %64 : vector<8x8xf32>
    %cst_29 = arith.constant dense<0.000000e+00> : vector<8x16xf32>
    %66 = tpu.matmul %65, %48, %cst_29 {dimension_numbers = #tpu.dot_dimension_numbers<[1], [0], [0], [1], [0, 0, 1, 1], [], []>} : vector<8x8xf32>, vector<8x16xf32>, vector<8x16xf32> -> vector<8x16xf32>
    %67 = tpu.concatenate %45, %66 in 1 : vector<8x16xf32>, vector<8x16xf32> -> vector<8x32xf32>
    %cst_30 = arith.constant dense<0.000000e+00> : vector<8x32xf32>
    %68 = tpu.matmul %67, %8, %cst_30 {dimension_numbers = #tpu.dot_dimension_numbers<[1], [0], [0], [1], [0, 0, 1, 1], [], []>} : vector<8x32xf32>, vector<32x32xf32>, vector<8x32xf32> -> vector<8x32xf32>
    %69 = vector.broadcast %9 : vector<1x32xf32> to vector<8x32xf32>
    %70 = arith.addf %68, %69 : vector<8x32xf32>
    %c0_31 = arith.constant 0 : index
    %c0_32 = arith.constant 0 : index
    %c0_33 = arith.constant 0 : index
    %71 = vector.load %arg8[%c0_31, %c0_32, %c0_33] : memref<1x8x32xf32, #tpu.memory_space<vmem>>, vector<1x8x32xf32>
    %72 = vector.shape_cast %71 : vector<1x8x32xf32> to vector<8x32xf32>
    %73 = vector.shape_cast %70 : vector<8x32xf32> to vector<1x8x32xf32>
    tpu.vector_store %arg8[%c0_31, %c0_32, %c0_33], %73 {strides = array<i32>} : memref<1x8x32xf32, #tpu.memory_space<vmem>>, vector<1x8x32xf32>,
    return
  }
  func.func @transform_0(%arg0: i32) -> (i32, i32, i32) {
    %c0_i32 = arith.constant 0 : i32
    %c0_i32_0 = arith.constant 0 : i32
    %c0_i32_1 = arith.constant 0 : i32
    return %arg0, %c0_i32, %c0_i32_0 : i32, i32, i32
  }
  func.func @transform_1(%arg0: i32) -> (i32, i32, i32) {
    %c0_i32 = arith.constant 0 : i32
    %c0_i32_0 = arith.constant 0 : i32
    %c0_i32_1 = arith.constant 0 : i32
    return %arg0, %c0_i32, %c0_i32_0 : i32, i32, i32
  }
  func.func @transform_2(%arg0: i32) -> (i32, i32, i32) {
    %c0_i32 = arith.constant 0 : i32
    %c0_i32_0 = arith.constant 0 : i32
    %c0_i32_1 = arith.constant 0 : i32
    return %arg0, %c0_i32, %c0_i32_0 : i32, i32, i32
  }
  func.func @transform_3(%arg0: i32) -> (i32, i32) {
    %c0_i32 = arith.constant 0 : i32
    %c0_i32_0 = arith.constant 0 : i32
    %c0_i32_1 = arith.constant 0 : i32
    return %c0_i32, %c0_i32_0 : i32, i32
  }
  func.func @transform_4(%arg0: i32) -> (i32, i32) {
    %c0_i32 = arith.constant 0 : i32
    %c0_i32_0 = arith.constant 0 : i32
    %c0_i32_1 = arith.constant 0 : i32
    return %c0_i32, %c0_i32_0 : i32, i32
  }
  func.func @transform_5(%arg0: i32) -> (i32, i32) {
    %c0_i32 = arith.constant 0 : i32
    %c0_i32_0 = arith.constant 0 : i32
    %c0_i32_1 = arith.constant 0 : i32
    return %c0_i32, %c0_i32_0 : i32, i32
  }
  func.func @transform_6(%arg0: i32) -> (i32, i32) {
    %c0_i32 = arith.constant 0 : i32
    %c0_i32_0 = arith.constant 0 : i32
    %c0_i32_1 = arith.constant 0 : i32
    return %c0_i32, %c0_i32_0 : i32, i32
  }
  func.func @transform_7(%arg0: i32) -> (i32, i32, i32) {
    %c0_i32 = arith.constant 0 : i32
    %c0_i32_0 = arith.constant 0 : i32
    %c0_i32_1 = arith.constant 0 : i32
    return %arg0, %c0_i32, %c0_i32_0 : i32, i32, i32
  }
}

</mosaic_0001>

<llo_original>
// kernel: tpu_custom_call.1
$region0: #{tpu_custom_call.1}
  #allocation0 [shape = 'u32[]', space=smem, size = 0x4, offset = 0x4, fixed_abs, tag = 'smem constant byte address 0x4 - core index']
  #allocation1 [shape = 'u32[72,128]{1,0:T(1,128)}', space=vmem, size = 0x9000, scoped, tag = 'internal scratch']
  %s0 = inlined_call_operand.hbm [shape: f32[2,8,32], index: 0, kind: input, shape index: {}]
  %s1 = inlined_call_operand.hbm [shape: f32[2,8,32], index: 1, kind: input, shape index: {}]
  %s2 = inlined_call_operand.hbm [shape: f32[2,8,32], index: 2, kind: input, shape index: {}]
  %s3 = inlined_call_operand.hbm [shape: f32[32,96], index: 3, kind: input, shape index: {}]
  %s4 = inlined_call_operand.vmem [shape: f32[1,96], index: 4, kind: input, shape index: {}]
  %s5 = inlined_call_operand.hbm [shape: f32[32,32], index: 5, kind: input, shape index: {}]
  %s6 = inlined_call_operand.vmem [shape: f32[1,32], index: 6, kind: input, shape index: {}]
  %s7 = inlined_call_operand.hbm [shape: f32[2,8,32], index: 7, kind: output, shape index: {}]
  %s8 = sld [smem:[#allocation0]]
  $region81: #{tpu_custom_call.1} parent=0
    _
  %s10 = ssub.s32 1, %s8
  %s11 = scalar_select 0, %s10, %s8
  $region1: #{tpu_custom_call.1} parent=0
    #allocation2 [shape = 'u8[8192]{0}', space=vmem, size = 0x2000, scoped, tag = 'input window, operand 0']
    #allocation3 [shape = 's32[2]{0}', space=sflag, size = 0x8, scoped, tag = 'scoped memory for tpu_custom_call.1']
    #allocation4 [shape = 's32[2]{0}', space=sflag, size = 0x8, scoped, tag = 'scoped memory for tpu_custom_call.1']
    #allocation5 [shape = 'u8[8192]{0}', space=vmem, size = 0x2000, scoped, tag = 'input window, operand 1']
    #allocation6 [shape = 's32[2]{0}', space=sflag, size = 0x8, scoped, tag = 'scoped memory for tpu_custom_call.1']
    #allocation7 [shape = 'u8[8192]{0}', space=vmem, size = 0x2000, scoped, tag = 'input window, operand 2']
    #allocation8 [shape = 'u8[16384]{0}', space=vmem, size = 0x4000, scoped, tag = 'input window, operand 3, single buffered']
    #allocation9 [shape = 's32[1]{0}', space=sflag, size = 0x4, scoped, tag = 'scoped memory for tpu_custom_call.1']
    #allocation10 [shape = 'u8[16384]{0}', space=vmem, size = 0x4000, scoped, tag = 'input window, operand 5, single buffered']
    #allocation11 [shape = 'u8[8192]{0}', space=vmem, size = 0x2000, scoped, tag = 'output window, operand 0']
    %12 = vsyncpa [#allocation3], 0
    %s13 = scalar_lea.sflag [#allocation3], 1
    %14 = vsyncpa %s13, 0
    %15 = vsyncpa [#allocation6], 0
    %s16 = scalar_lea.sflag [#allocation6], 1
    %17 = vsyncpa %s16, 0
    %18 = vsyncpa [#allocation9], 0
    %19 = vsyncpa [#allocation4], 0
    %s20 = scalar_lea.sflag [#allocation4], 1
    %21 = vsyncpa %s20, 0
    loop: start=0, step=1, limit=4
    $region2: #{tpu_custom_call.1} parent=1 // loop_pre_header
      _
    $region3: #{tpu_custom_call.1} parent=1 // loop_header
      %s23 = sphi 0, %s27
      %p24 = scmp.ge.s32.totalorder %s23, 4
      %s33 = sphi 0, %s35
      %s36 = sphi 0, %s33
      %s37 = sphi 0, %s36
      %s53 = sphi 0, %s37
      %s59 = sphi 0, %s61
      %s62 = sphi 0, %s59
      %s63 = sphi 0, %s62
      %s79 = sphi 0, %s63
      %s85 = sphi 0, %s87
      %s88 = sphi 0, %s85
      %s89 = sphi 0, %s88
      %s105 = sphi 0, %s89
      %s109 = sphi 0, %s109
      %s111 = sphi 0, %s109
      %s112 = sphi 0, %s111
      %s126 = sphi 0, %s112
      %s130 = sphi 0, %s130
      %s132 = sphi 0, %s130
      %s133 = sphi 0, %s132
      %s147 = sphi 0, %s133
      %s151 = sphi 0, %s151
      %s153 = sphi 0, %s151
      %s154 = sphi 0, %s153
      %s168 = sphi 0, %s154
      %s172 = sphi 0, %s172
      %s174 = sphi 0, %s172
      %s175 = sphi 0, %s174
      %s189 = sphi 0, %s175
      %s195 = sphi 0, %s197
      %s198 = sphi 0, %s195
      %s199 = sphi 0, %s198
      %s215 = sphi 0, %s199
    $region4: #{tpu_custom_call.1} parent=1 // loop_header_branch
      %26 = sbr.rel (%p24) target = $region8
    $region5: #{tpu_custom_call.1} parent=1 // loop_body
      %s28 = ssub.s32 %s23, 1
      %s29 = ssub.s32 %s23, 2
      %s30 = sadd.s32 %s23, 1
      %s31 = ssub.s32 %s23, %s30
      %p32 = scmp.eq.s32.totalorder %s31, 0
      %s34 = sadd.s32 %s33, 1
      %s35 = scalar_select %p32, %s33, %s34
      %p38 = pneg %p32
      %p39 = scmp.eq.s32.totalorder %s23, 1
      %p40 = por %p38, %p39
      %p41 = scmp.ne.s32.totalorder %s33, %s36
      %p42 = scmp.eq.s32.totalorder %s23, 0
      %p43 = por %p41, %p42
      %p44 = scmp.ne.s32.totalorder %s33, %s36
      %p45 = scmp.eq.s32.totalorder %s28, 1
      %p46 = por %p44, %p45
      %p47 = scmp.ne.s32.totalorder %s36, %s37
      %p48 = scmp.eq.s32.totalorder %s28, 0
      %p49 = por %p47, %p48
      %p50 = scmp.ne.s32.totalorder %s36, %s37
      %p51 = scmp.eq.s32.totalorder %s29, 1
      %p52 = por %p50, %p51
      %p54 = scmp.ne.s32.totalorder %s37, %s53
      %p55 = scmp.eq.s32.totalorder %s29, 0
      %p56 = por %p54, %p55
      %s57 = ssub.s32 %s23, %s30
      %p58 = scmp.eq.s32.totalorder %s57, 0
      %s60 = sadd.s32 %s59, 1
      %s61 = scalar_select %p58, %s59, %s60
      %p64 = pneg %p58
      %p65 = scmp.eq.s32.totalorder %s23, 1
      %p66 = por %p64, %p65
      %p67 = scmp.ne.s32.totalorder %s59, %s62
      %p68 = scmp.eq.s32.totalorder %s23, 0
      %p69 = por %p67, %p68
      %p70 = scmp.ne.s32.totalorder %s59, %s62
      %p71 = scmp.eq.s32.totalorder %s28, 1
      %p72 = por %p70, %p71
      %p73 = scmp.ne.s32.totalorder %s62, %s63
      %p74 = scmp.eq.s32.totalorder %s28, 0
      %p75 = por %p73, %p74
      %p76 = scmp.ne.s32.totalorder %s62, %s63
      %p77 = scmp.eq.s32.totalorder %s29, 1
      %p78 = por %p76, %p77
      %p80 = scmp.ne.s32.totalorder %s63, %s79
      %p81 = scmp.eq.s32.totalorder %s29, 0
      %p82 = por %p80, %p81
      %s83 = ssub.s32 %s23, %s30
      %p84 = scmp.eq.s32.totalorder %s83, 0
      %s86 = sadd.s32 %s85, 1
      %s87 = scalar_select %p84, %s85, %s86
      %p90 = pneg %p84
      %p91 = scmp.eq.s32.totalorder %s23, 1
      %p92 = por %p90, %p91
      %p93 = scmp.ne.s32.totalorder %s85, %s88
      %p94 = scmp.eq.s32.totalorder %s23, 0
      %p95 = por %p93, %p94
      %p96 = scmp.ne.s32.totalorder %s85, %s88
      %p97 = scmp.eq.s32.totalorder %s28, 1
      %p98 = por %p96, %p97
      %p99 = scmp.ne.s32.totalorder %s88, %s89
      %p100 = scmp.eq.s32.totalorder %s28, 0
      %p101 = por %p99, %p100
      %p102 = scmp.ne.s32.totalorder %s88, %s89
      %p103 = scmp.eq.s32.totalorder %s29, 1
      %p104 = por %p102, %p103
      %p106 = scmp.ne.s32.totalorder %s89, %s105
      %p107 = scmp.eq.s32.totalorder %s29, 0
      %p108 = por %p106, %p107
      %s110 = sadd.s32 %s109, 1
      %p113 = scmp.eq.s32.totalorder %s23, 1
      %p114 = scmp.ne.s32.totalorder %s109, %s111
      %p115 = scmp.eq.s32.totalorder %s23, 0
      %p116 = por %p114, %p115
      %p117 = scmp.ne.s32.totalorder %s109, %s111
      %p118 = scmp.eq.s32.totalorder %s28, 1
      %p119 = por %p117, %p118
      %p120 = scmp.ne.s32.totalorder %s111, %s112
      %p121 = scmp.eq.s32.totalorder %s28, 0
      %p122 = por %p120, %p121
      %p123 = scmp.ne.s32.totalorder %s111, %s112
      %p124 = scmp.eq.s32.totalorder %s29, 1
      %p125 = por %p123, %p124
      %p127 = scmp.ne.s32.totalorder %s112, %s126
      %p128 = scmp.eq.s32.totalorder %s29, 0
      %p129 = por %p127, %p128
      %s131 = sadd.s32 %s130, 1
      %p134 = scmp.eq.s32.totalorder %s23, 1
      %p135 = scmp.ne.s32.totalorder %s130, %s132
      %p136 = scmp.eq.s32.totalorder %s23, 0
      %p137 = por %p135, %p136
      %p138 = scmp.ne.s32.totalorder %s130, %s132
      %p139 = scmp.eq.s32.totalorder %s28, 1
      %p140 = por %p138, %p139
      %p141 = scmp.ne.s32.totalorder %s132, %s133
      %p142 = scmp.eq.s32.totalorder %s28, 0
      %p143 = por %p141, %p142
      %p144 = scmp.ne.s32.totalorder %s132, %s133
      %p145 = scmp.eq.s32.totalorder %s29, 1
      %p146 = por %p144, %p145
      %p148 = scmp.ne.s32.totalorder %s133, %s147
      %p149 = scmp.eq.s32.totalorder %s29, 0
      %p150 = por %p148, %p149
      %s152 = sadd.s32 %s151, 1
      %p155 = scmp.eq.s32.totalorder %s23, 1
      %p156 = scmp.ne.s32.totalorder %s151, %s153
      %p157 = scmp.eq.s32.totalorder %s23, 0
      %p158 = por %p156, %p157
      %p159 = scmp.ne.s32.totalorder %s151, %s153
      %p160 = scmp.eq.s32.totalorder %s28, 1
      %p161 = por %p159, %p160
      %p162 = scmp.ne.s32.totalorder %s153, %s154
      %p163 = scmp.eq.s32.totalorder %s28, 0
      %p164 = por %p162, %p163
      %p165 = scmp.ne.s32.totalorder %s153, %s154
      %p166 = scmp.eq.s32.totalorder %s29, 1
      %p167 = por %p165, %p166
      %p169 = scmp.ne.s32.totalorder %s154, %s168
      %p170 = scmp.eq.s32.totalorder %s29, 0
      %p171 = por %p169, %p170
      %s173 = sadd.s32 %s172, 1
      %p176 = scmp.eq.s32.totalorder %s23, 1
      %p177 = scmp.ne.s32.totalorder %s172, %s174
      %p178 = scmp.eq.s32.totalorder %s23, 0
      %p179 = por %p177, %p178
      %p180 = scmp.ne.s32.totalorder %s172, %s174
      %p181 = scmp.eq.s32.totalorder %s28, 1
      %p182 = por %p180, %p181
      %p183 = scmp.ne.s32.totalorder %s174, %s175
      %p184 = scmp.eq.s32.totalorder %s28, 0
      %p185 = por %p183, %p184
      %p186 = scmp.ne.s32.totalorder %s174, %s175
      %p187 = scmp.eq.s32.totalorder %s29, 1
      %p188 = por %p186, %p187
      %p190 = scmp.ne.s32.totalorder %s175, %s189
      %p191 = scmp.eq.s32.totalorder %s29, 0
      %p192 = por %p190, %p191
      %s193 = ssub.s32 %s23, %s30
      %p194 = scmp.eq.s32.totalorder %s193, 0
      %s196 = sadd.s32 %s195, 1
      %s197 = scalar_select %p194, %s195, %s196
      %p200 = pneg %p194
      %p201 = scmp.eq.s32.totalorder %s23, 1
      %p202 = por %p200, %p201
      %p203 = scmp.ne.s32.totalorder %s195, %s198
      %p204 = scmp.eq.s32.totalorder %s23, 0
      %p205 = por %p203, %p204
      %p206 = scmp.ne.s32.totalorder %s195, %s198
      %p207 = scmp.eq.s32.totalorder %s28, 1
      %p208 = por %p206, %p207
      %p209 = scmp.ne.s32.totalorder %s198, %s199
      %p210 = scmp.eq.s32.totalorder %s28, 0
      %p211 = por %p209, %p210
      %p212 = scmp.ne.s32.totalorder %s198, %s199
      %p213 = scmp.eq.s32.totalorder %s29, 1
      %p214 = por %p212, %p213
      %p216 = scmp.ne.s32.totalorder %s199, %s215
      %p217 = scmp.eq.s32.totalorder %s29, 0
      %p218 = por %p216, %p217
      %p219 = scmp.le.s32.totalorder 1, %s23
      %p220 = scmp.lt.s32.totalorder %s23, 3
      %p221 = pnand %p219, %p220
      %p222 = pneg %p221
      // Predicated region
      $region9: #{tpu_custom_call.1} parent=5 // pred_check
        _
      $region10: #{tpu_custom_call.1} parent=5 // pred_check_branch
        %224 = sbr.rel (%p221) target = $region12
      $region11: #{tpu_custom_call.1} parent=5 // pred_region
        %s225 = ssub.s32 %s23, 1
        // Predicated region
        $region13: #{tpu_custom_call.1} parent=11 // pred_check
          %p226 = pneg %p122
        $region14: #{tpu_custom_call.1} parent=11 // pred_check_branch
          %228 = sbr.rel (%p226) target = $region16
        $region15: #{tpu_custom_call.1} parent=11 // pred_region
          %230 = vsyncadd [#allocation9], 0
          %s231 = sshll.u32 %s3, 4
          %s232 = int_to_ptr.hbm [resolvable:$true] %s231
          %s233 = sshll.u32 [#allocation8], 4
          %s234 = int_to_ptr.vmem [resolvable:$true] %s233
          %239 = dma.hbm_to_vmem [thread:$0]  %s232, 512, %s234, [#allocation9], 128, 128, 8
        $region16: #{tpu_custom_call.1} parent=11 // pred_fallthru
          _
        // Predicated region
        $region17: #{tpu_custom_call.1} parent=11 // pred_check
          %p240 = pneg %p143
        $region18: #{tpu_custom_call.1} parent=11 // pred_check_branch
          %242 = sbr.rel (%p240) target = $region20
        $region19: #{tpu_custom_call.1} parent=11 // pred_region
          _
        $region20: #{tpu_custom_call.1} parent=11 // pred_fallthru
          _
        // Predicated region
        $region21: #{tpu_custom_call.1} parent=11 // pred_check
          %p243 = pneg %p164
        $region22: #{tpu_custom_call.1} parent=11 // pred_check_branch
          %245 = sbr.rel (%p243) target = $region24
        $region23: #{tpu_custom_call.1} parent=11 // pred_region
          %247 = vsyncadd [#allocation9], 0
          %s248 = sshll.u32 %s5, 4
          %s249 = int_to_ptr.hbm [resolvable:$true] %s248
          %s250 = sshll.u32 [#allocation10], 4
          %s251 = int_to_ptr.vmem [resolvable:$true] %s250
          %256 = dma.hbm_to_vmem [thread:$0]  %s249, 512, %s251, [#allocation9], 128, 128, 8
        $region24: #{tpu_custom_call.1} parent=11 // pred_fallthru
          _
        // Predicated region
        $region25: #{tpu_custom_call.1} parent=11 // pred_check
          %p257 = pneg %p185
        $region26: #{tpu_custom_call.1} parent=11 // pred_check_branch
          %259 = sbr.rel (%p257) target = $region28
        $region27: #{tpu_custom_call.1} parent=11 // pred_region
          _
        $region28: #{tpu_custom_call.1} parent=11 // pred_fallthru
          _
      $region12: #{tpu_custom_call.1} parent=5 // pred_fallthru
        _
      %p260 = scmp.lt.s32.totalorder %s23, 2
      // Predicated region
      $region29: #{tpu_custom_call.1} parent=5 // pred_check
        %p261 = pneg %p260
      $region30: #{tpu_custom_call.1} parent=5 // pred_check_branch
        %263 = sbr.rel (%p261) target = $region32
      $region31: #{tpu_custom_call.1} parent=5 // pred_region
        // Predicated region
        $region33: #{tpu_custom_call.1} parent=31 // pred_check
          %p264 = pneg %p43
        $region34: #{tpu_custom_call.1} parent=31 // pred_check_branch
          %266 = sbr.rel (%p264) target = $region36
        $region35: #{tpu_custom_call.1} parent=31 // pred_region
          %s267 = sand.u32 %s33, 1
          %s268 = scalar_lea.sflag [#allocation3], %s267
          %s269 = sand.u32 %s33, 1
          %s270 = smul.addr %s269, 8
          %s271 = scalar_lea.vmem [#allocation2], %s270
          %273 = vsyncadd %s268, 0
          %s274 = smul.addr %s23, 8
          %s275 = scalar_lea.hbm %s0, %s274
          %s277 = sshll.u32 %s275, 4
          %s278 = int_to_ptr.hbm [resolvable:$true] %s277
          %s279 = sshll.u32 %s271, 4
          %s280 = int_to_ptr.vmem [resolvable:$true] %s279
          %282 = dma.hbm_to_vmem [thread:$0]  %s278, 128, %s280, %s268
        $region36: #{tpu_custom_call.1} parent=31 // pred_fallthru
          _
        // Predicated region
        $region37: #{tpu_custom_call.1} parent=31 // pred_check
          %p283 = pneg %p69
        $region38: #{tpu_custom_call.1} parent=31 // pred_check_branch
          %285 = sbr.rel (%p283) target = $region40
        $region39: #{tpu_custom_call.1} parent=31 // pred_region
          %s286 = sand.u32 %s23, 1
          %s287 = scalar_lea.sflag [#allocation6], %s286
          %s288 = sand.u32 %s59, 1
          %s289 = smul.addr %s288, 8
          %s290 = scalar_lea.vmem [#allocation5], %s289
          %292 = vsyncadd %s287, 0
          %s293 = smul.addr %s23, 8
          %s294 = scalar_lea.hbm %s1, %s293
          %s296 = sshll.u32 %s294, 4
          %s297 = int_to_ptr.hbm [resolvable:$true] %s296
          %s298 = sshll.u32 %s290, 4
          %s299 = int_to_ptr.vmem [resolvable:$true] %s298
          %301 = dma.hbm_to_vmem [thread:$0]  %s297, 128, %s299, %s287
        $region40: #{tpu_custom_call.1} parent=31 // pred_fallthru
          _
        // Predicated region
        $region41: #{tpu_custom_call.1} parent=31 // pred_check
          %p302 = pneg %p95
        $region42: #{tpu_custom_call.1} parent=31 // pred_check_branch
          %304 = sbr.rel (%p302) target = $region44
        $region43: #{tpu_custom_call.1} parent=31 // pred_region
          %s305 = sand.u32 %s23, 1
          %s306 = scalar_lea.sflag [#allocation6], %s305
          %s307 = sand.u32 %s85, 1
          %s308 = smul.addr %s307, 8
          %s309 = scalar_lea.vmem [#allocation7], %s308
          %311 = vsyncadd %s306, 0
          %s312 = smul.addr %s23, 8
          %s313 = scalar_lea.hbm %s2, %s312
          %s315 = sshll.u32 %s313, 4
          %s316 = int_to_ptr.hbm [resolvable:$true] %s315
          %s317 = sshll.u32 %s309, 4
          %s318 = int_to_ptr.vmem [resolvable:$true] %s317
          %320 = dma.hbm_to_vmem [thread:$0]  %s316, 128, %s318, %s306
        $region44: #{tpu_custom_call.1} parent=31 // pred_fallthru
          _
      $region32: #{tpu_custom_call.1} parent=5 // pred_fallthru
        _
      %p321 = scmp.le.s32.totalorder 1, %s23
      %p322 = scmp.lt.s32.totalorder %s23, 3
      %p323 = pnand %p321, %p322
      %p324 = pneg %p323
      // Predicated region
      $region45: #{tpu_custom_call.1} parent=5 // pred_check
        _
      $region46: #{tpu_custom_call.1} parent=5 // pred_check_branch
        %326 = sbr.rel (%p323) target = $region48
      $region47: #{tpu_custom_call.1} parent=5 // pred_region
        %s327 = ssub.s32 %s23, 1
        %s328 = sand.u32 %s36, 1
        %s329 = scalar_lea.sflag [#allocation3], %s328
        %s330 = sand.u32 %s36, 1
        %s331 = smul.addr %s330, 8
        %s332 = scalar_lea.vmem [#allocation2], %s331
        // Predicated region
        $region49: #{tpu_custom_call.1} parent=47 // pred_check
          %p333 = pneg %p49
        $region50: #{tpu_custom_call.1} parent=47 // pred_check_branch
          %335 = sbr.rel (%p333) target = $region52
        $region51: #{tpu_custom_call.1} parent=47 // pred_region
          %337 = dma.done %s329, 128
        $region52: #{tpu_custom_call.1} parent=47 // pred_fallthru
          _
        %s338 = sand.u32 %s28, 1
        %s339 = scalar_lea.sflag [#allocation6], %s338
        %s340 = sand.u32 %s62, 1
        %s341 = smul.addr %s340, 8
        %s342 = scalar_lea.vmem [#allocation5], %s341
        // Predicated region
        $region53: #{tpu_custom_call.1} parent=47 // pred_check
          %p343 = pneg %p75
        $region54: #{tpu_custom_call.1} parent=47 // pred_check_branch
          %345 = sbr.rel (%p343) target = $region56
        $region55: #{tpu_custom_call.1} parent=47 // pred_region
          %347 = dma.done %s339, 128
        $region56: #{tpu_custom_call.1} parent=47 // pred_fallthru
          _
        %s348 = sand.u32 %s28, 1
        %s349 = scalar_lea.sflag [#allocation6], %s348
        %s350 = sand.u32 %s88, 1
        %s351 = smul.addr %s350, 8
        %s352 = scalar_lea.vmem [#allocation7], %s351
        // Predicated region
        $region57: #{tpu_custom_call.1} parent=47 // pred_check
          %p353 = pneg %p101
        $region58: #{tpu_custom_call.1} parent=47 // pred_check_branch
          %355 = sbr.rel (%p353) target = $region60
        $region59: #{tpu_custom_call.1} parent=47 // pred_region
          %357 = dma.done %s349, 128
        $region60: #{tpu_custom_call.1} parent=47 // pred_fallthru
          _
        // Predicated region
        $region61: #{tpu_custom_call.1} parent=47 // pred_check
          %p358 = pneg %p122
        $region62: #{tpu_custom_call.1} parent=47 // pred_check_branch
          %360 = sbr.rel (%p358) target = $region64
        $region63: #{tpu_custom_call.1} parent=47 // pred_region
          %362 = dma.done [#allocation9], 512
        $region64: #{tpu_custom_call.1} parent=47 // pred_fallthru
          _
        // Predicated region
        $region65: #{tpu_custom_call.1} parent=47 // pred_check
          %p363 = pneg %p164
        $region66: #{tpu_custom_call.1} parent=47 // pred_check_branch
          %365 = sbr.rel (%p363) target = $region68
        $region67: #{tpu_custom_call.1} parent=47 // pred_region
          %367 = dma.done [#allocation9], 512
        $region68: #{tpu_custom_call.1} parent=47 // pred_fallthru
          _
        %s368 = sand.u32 %s36, 1
        %s369 = scalar_lea.sflag [#allocation3], %s368
        %s370 = sand.u32 %s36, 1
        %s371 = smul.addr %s370, 8
        %s372 = scalar_lea.vmem [#allocation2], %s371
        %p373 = pneg %p49
        %p374 = pneg %p46
        %s375 = sand.u32 %s28, 1
        %s376 = scalar_lea.sflag [#allocation6], %s375
        %s377 = sand.u32 %s62, 1
        %s378 = smul.addr %s377, 8
        %s379 = scalar_lea.vmem [#allocation5], %s378
        %p380 = pneg %p75
        %p381 = pneg %p72
        %s382 = sand.u32 %s28, 1
        %s383 = scalar_lea.sflag [#allocation6], %s382
        %s384 = sand.u32 %s88, 1
        %s385 = smul.addr %s384, 8
        %s386 = scalar_lea.vmem [#allocation7], %s385
        %p387 = pneg %p101
        %p388 = pneg %p98
        %p389 = pneg %p122
        %p390 = pneg %p119
        %p391 = pneg %p143
        %p392 = pneg %p140
        %p393 = pneg %p164
        %p394 = pneg %p161
        %p395 = pneg %p185
        %p396 = pneg %p182
        %p397 = pneg %p211
        %p398 = pneg %p208
        %s399 = sand.u32 %s198, 1
        %s400 = scalar_lea.sflag [#allocation4], %s399
        %s401 = sand.u32 %s198, 1
        %s402 = smul.addr %s401, 8
        %s403 = scalar_lea.vmem [#allocation11], %s402
        %v404 = vld [vmem:[%s332] sm:$0xff]
        %v405 = vld [vmem:[%s342] sm:$0xff]
        %v406 = vld [vmem:[%s352] sm:$0xff]
        %v407 = vld [vmem:[#allocation8] sm:$0xff]
        %v408 = vld [vmem:[#allocation8 + $0x8] sm:$0xff]
        %v409 = vld [vmem:[#allocation8 + $0x10] sm:$0xff]
        %v410 = vld [vmem:[#allocation8 + $0x18] sm:$0xff]
        %v411 = vld [vmem:[%s4] sm:$0x1]
        %v412 = vld [vmem:[#allocation10] sm:$0xff]
        %v413 = vld [vmem:[#allocation10 + $0x8] sm:$0xff]
        %v414 = vld [vmem:[#allocation10 + $0x10] sm:$0xff]
        %v415 = vld [vmem:[#allocation10 + $0x18] sm:$0xff]
        %v416 = vld [vmem:[%s6] sm:$0x1]
        %v418 = vperm.slane %v411, 0
        %vm420 = vcmask 261120
        %v422 = vsel %vm420, %v404, 0
        %424 = vmatpush.msra.mxu0 0.0
        %425 = vmatpush.msra.mxu0 0.0
        %426 = vmatpush.msra.mxu0 0.0
        %427 = vmatpush.msra.mxu0 0.0
        %428 = vmatpush.msra.mxu0 0.0
        %429 = vmatpush.msra.mxu0 0.0
        %430 = vmatpush.msra.mxu0 0.0
        %431 = vmatpush.msra.mxu0 0.0
        %432 = vmatpush.msra.mxu0 0.0
        %433 = vmatpush.msra.mxu0 0.0
        %434 = vmatpush.msra.mxu0 0.0
        %435 = vmatpush.msra.mxu0 0.0
        %436 = vmatpush.msra.mxu0 %v410
        %437 = vmatpush.msra.mxu0 %v409
        %438 = vmatpush.msra.mxu0 %v408
        %439 = vmatpush.msra.mxu0 %v407
        %440 = vmatmul.f32.gmra.mxu0 %v422
        %v441 = vpop.f32.mrf.mxu0
        %v442 = vadd.f32 %v418, %v441
        %443 = vdwg.mxu0
        %448 = vrot.lane.b32.xlu0 %v407, 96
        %v449 = vpop.permute.xlu0 %448
        %450 = vrot.lane.b32.xlu0 %v408, 96
        %v451 = vpop.permute.xlu0 %450
        %452 = vrot.lane.b32.xlu0 %v409, 96
        %v453 = vpop.permute.xlu0 %452
        %454 = vrot.lane.b32.xlu0 %v410, 96
        %v455 = vpop.permute.xlu0 %454
        %460 = vrot.lane.b32.xlu0 %v418, 96
        %v461 = vpop.permute.xlu0 %460
        %v464 = vsel %vm420, %v405, 0
        %466 = vmatpush.msra.mxu0 0.0
        %467 = vmatpush.msra.mxu0 0.0
        %468 = vmatpush.msra.mxu0 0.0
        %469 = vmatpush.msra.mxu0 0.0
        %470 = vmatpush.msra.mxu0 0.0
        %471 = vmatpush.msra.mxu0 0.0
        %472 = vmatpush.msra.mxu0 0.0
        %473 = vmatpush.msra.mxu0 0.0
        %474 = vmatpush.msra.mxu0 0.0
        %475 = vmatpush.msra.mxu0 0.0
        %476 = vmatpush.msra.mxu0 0.0
        %477 = vmatpush.msra.mxu0 0.0
        %478 = vmatpush.msra.mxu0 %v455
        %479 = vmatpush.msra.mxu0 %v453
        %480 = vmatpush.msra.mxu0 %v451
        %481 = vmatpush.msra.mxu0 %v449
        %482 = vmatmul.f32.gmra.mxu0 %v464
        %v483 = vpop.f32.mrf.mxu0
        %v484 = vadd.f32 %v461, %v483
        %485 = vdwg.mxu0
        %486 = vrot.lane.b32.xlu0 %v407, 64
        %v487 = vpop.permute.xlu0 %486
        %488 = vrot.lane.b32.xlu0 %v408, 64
        %v489 = vpop.permute.xlu0 %488
        %490 = vrot.lane.b32.xlu0 %v409, 64
        %v491 = vpop.permute.xlu0 %490
        %492 = vrot.lane.b32.xlu0 %v410, 64
        %v493 = vpop.permute.xlu0 %492
        %498 = vrot.lane.b32.xlu0 %v418, 64
        %v499 = vpop.permute.xlu0 %498
        %v502 = vsel %vm420, %v406, 0
        %504 = vmatpush.msra.mxu0 0.0
        %505 = vmatpush.msra.mxu0 0.0
        %506 = vmatpush.msra.mxu0 0.0
        %507 = vmatpush.msra.mxu0 0.0
        %508 = vmatpush.msra.mxu0 0.0
        %509 = vmatpush.msra.mxu0 0.0
        %510 = vmatpush.msra.mxu0 0.0
        %511 = vmatpush.msra.mxu0 0.0
        %512 = vmatpush.msra.mxu0 0.0
        %513 = vmatpush.msra.mxu0 0.0
        %514 = vmatpush.msra.mxu0 0.0
        %515 = vmatpush.msra.mxu0 0.0
        %516 = vmatpush.msra.mxu0 %v493
        %517 = vmatpush.msra.mxu0 %v491
        %518 = vmatpush.msra.mxu0 %v489
        %519 = vmatpush.msra.mxu0 %v487
        %520 = vmatmul.f32.gmra.mxu0 %v502
        %v521 = vpop.f32.mrf.mxu0
        %v522 = vadd.f32 %v499, %v521
        %523 = vdwg.mxu0
        %vm524 = vcmask 130048
        %v526 = vsel %vm524, %v442, 0
        %v529 = vsel %vm524, %v484, 0
        %531 = vmatpush.xpose.msra.mxu0 0.0
        %532 = vmatpush.xpose.msra.mxu0 0.0
        %533 = vmatpush.xpose.msra.mxu0 0.0
        %534 = vmatpush.xpose.msra.mxu0 0.0
        %535 = vmatpush.xpose.msra.mxu0 0.0
        %536 = vmatpush.xpose.msra.mxu0 0.0
        %537 = vmatpush.xpose.msra.mxu0 0.0
        %538 = vmatpush.xpose.msra.mxu0 0.0
        %539 = vmatpush.xpose.msra.mxu0 0.0
        %540 = vmatpush.xpose.msra.mxu0 0.0
        %541 = vmatpush.xpose.msra.mxu0 0.0
        %542 = vmatpush.xpose.msra.mxu0 0.0
        %543 = vmatpush.xpose.msra.mxu0 0.0
        %544 = vmatpush.xpose.msra.mxu0 0.0
        %545 = vmatpush.xpose.msra.mxu0 0.0
        %546 = vmatpush.xpose.msra.mxu0 %v529
        %547 = vmatmul.f32.gmra.mxu0 %v526
        %v548 = vpop.f32.mrf.mxu0
        %v549 = vadd.f32 0.0, %v548
        %550 = vdwg.mxu0
        %v551 = vmul.f32 %v549, 0.25
        %vm552 = vcmask 64512
        %v553 = vsel %vm552, %v551, -inf
        %554 = vmax.xlane.f32.xlu0 %v553
        %v555 = vpop.xlane.xlu0 %554
        %v556 = vsub.f32 %v551, %v555
        %v557 = vmul.f32 %v556, 1.442695
        %v558 = vpow.pop %v557
        %v559 = vsel %vm552, %v558, 0.0
        %560 = vadd.xlane.f32.xlu0 %v559
        %v561 = vpop.xlane.xlu0 %560
        %v562 = vrcp.pop %v561
        %v563 = vmul.f32 %v561, %v562
        %v564 = vsub.f32 2.0, %v563
        %v565 = vmul.f32 %v562, %v564
        %v566 = vmul.f32 %v558, %v565
        %v568 = vsel %vm552, %v566, 0
        %570 = vmatpush.msra.mxu0 0.0
        %571 = vmatpush.msra.mxu0 0.0
        %572 = vmatpush.msra.mxu0 0.0
        %573 = vmatpush.msra.mxu0 0.0
        %574 = vmatpush.msra.mxu0 0.0
        %575 = vmatpush.msra.mxu0 0.0
        %576 = vmatpush.msra.mxu0 0.0
        %577 = vmatpush.msra.mxu0 0.0
        %578 = vmatpush.msra.mxu0 0.0
        %579 = vmatpush.msra.mxu0 0.0
        %580 = vmatpush.msra.mxu0 0.0
        %581 = vmatpush.msra.mxu0 0.0
        %582 = vmatpush.msra.mxu0 0.0
        %583 = vmatpush.msra.mxu0 0.0
        %584 = vmatpush.msra.mxu0 0.0
        %585 = vmatpush.msra.mxu0 %v522
        %586 = vmatmul.f32.gmra.mxu0 %v568
        %v587 = vpop.f32.mrf.mxu0
        %v588 = vadd.f32 0.0, %v587
        %589 = vdwg.mxu0
        %590 = vrot.lane.b32.xlu0 %v442, 112
        %v591 = vpop.permute.xlu0 %590
        %592 = vrot.lane.b32.xlu0 %v484, 112
        %v593 = vpop.permute.xlu0 %592
        %v594 = vsel %vm524, %v591, 0
        %v596 = vsel %vm524, %v593, 0
        %598 = vmatpush.xpose.msra.mxu0 0.0
        %599 = vmatpush.xpose.msra.mxu0 0.0
        %600 = vmatpush.xpose.msra.mxu0 0.0
        %601 = vmatpush.xpose.msra.mxu0 0.0
        %602 = vmatpush.xpose.msra.mxu0 0.0
        %603 = vmatpush.xpose.msra.mxu0 0.0
        %604 = vmatpush.xpose.msra.mxu0 0.0
        %605 = vmatpush.xpose.msra.mxu0 0.0
        %606 = vmatpush.xpose.msra.mxu0 0.0
        %607 = vmatpush.xpose.msra.mxu0 0.0
        %608 = vmatpush.xpose.msra.mxu0 0.0
        %609 = vmatpush.xpose.msra.mxu0 0.0
        %610 = vmatpush.xpose.msra.mxu0 0.0
        %611 = vmatpush.xpose.msra.mxu0 0.0
        %612 = vmatpush.xpose.msra.mxu0 0.0
        %613 = vmatpush.xpose.msra.mxu0 %v596
        %614 = vmatmul.f32.gmra.mxu0 %v594
        %v615 = vpop.f32.mrf.mxu0
        %v616 = vadd.f32 0.0, %v615
        %617 = vdwg.mxu0
        %v618 = vmul.f32 %v616, 0.25
        %v619 = vsel %vm552, %v618, -inf
        %620 = vmax.xlane.f32.xlu0 %v619
        %v621 = vpop.xlane.xlu0 %620
        %v622 = vsub.f32 %v618, %v621
        %v623 = vmul.f32 %v622, 1.442695
        %v624 = vpow.pop %v623
        %v625 = vsel %vm552, %v624, 0.0
        %626 = vadd.xlane.f32.xlu0 %v625
        %v627 = vpop.xlane.xlu0 %626
        %v628 = vrcp.pop %v627
        %v629 = vmul.f32 %v627, %v628
        %v630 = vsub.f32 2.0, %v629
        %v631 = vmul.f32 %v628, %v630
        %v632 = vmul.f32 %v624, %v631
        %634 = vrot.lane.b32.xlu0 %v522, 112
        %v635 = vpop.permute.xlu0 %634
        %v638 = vsel %vm552, %v632, 0
        %640 = vmatpush.msra.mxu0 0.0
        %641 = vmatpush.msra.mxu0 0.0
        %642 = vmatpush.msra.mxu0 0.0
        %643 = vmatpush.msra.mxu0 0.0
        %644 = vmatpush.msra.mxu0 0.0
        %645 = vmatpush.msra.mxu0 0.0
        %646 = vmatpush.msra.mxu0 0.0
        %647 = vmatpush.msra.mxu0 0.0
        %648 = vmatpush.msra.mxu0 0.0
        %649 = vmatpush.msra.mxu0 0.0
        %650 = vmatpush.msra.mxu0 0.0
        %651 = vmatpush.msra.mxu0 0.0
        %652 = vmatpush.msra.mxu0 0.0
        %653 = vmatpush.msra.mxu0 0.0
        %654 = vmatpush.msra.mxu0 0.0
        %655 = vmatpush.msra.mxu0 %v635
        %656 = vmatmul.f32.gmra.mxu0 %v638
        %v657 = vpop.f32.mrf.mxu0
        %v658 = vadd.f32 0.0, %v657
        %659 = vdwg.mxu0
        %661 = vrot.lane.b32.xlu0 %v658, 16
        %v662 = vpop.permute.xlu0 %661
        %v664 = vsel %vm524, %v588, %v662
        %v666 = vperm.slane %v416, 0
        %v669 = vsel %vm420, %v664, 0
        %671 = vmatpush.msra.mxu0 0.0
        %672 = vmatpush.msra.mxu0 0.0
        %673 = vmatpush.msra.mxu0 0.0
        %674 = vmatpush.msra.mxu0 0.0
        %675 = vmatpush.msra.mxu0 0.0
        %676 = vmatpush.msra.mxu0 0.0
        %677 = vmatpush.msra.mxu0 0.0
        %678 = vmatpush.msra.mxu0 0.0
        %679 = vmatpush.msra.mxu0 0.0
        %680 = vmatpush.msra.mxu0 0.0
        %681 = vmatpush.msra.mxu0 0.0
        %682 = vmatpush.msra.mxu0 0.0
        %683 = vmatpush.msra.mxu0 %v415
        %684 = vmatpush.msra.mxu0 %v414
        %685 = vmatpush.msra.mxu0 %v413
        %686 = vmatpush.msra.mxu0 %v412
        %687 = vmatmul.f32.gmra.mxu0 %v669
        %v688 = vpop.f32.mrf.mxu0
        %v689 = vadd.f32 %v666, %v688
        %690 = vdwg.mxu0
        %691 = vst.msk [vmem:[%s403] sm:$0xff] %vm420, %v689
        %s692 = sand.u32 %s198, 1
        %s693 = scalar_lea.sflag [#allocation4], %s692
        %s694 = sand.u32 %s198, 1
        %s695 = smul.addr %s694, 8
        %s696 = scalar_lea.vmem [#allocation11], %s695
        // Predicated region
        $region69: #{tpu_custom_call.1} parent=47 // pred_check
          %p697 = pneg %p208
        $region70: #{tpu_custom_call.1} parent=47 // pred_check_branch
          %699 = sbr.rel (%p697) target = $region72
        $region71: #{tpu_custom_call.1} parent=47 // pred_region
          %701 = vsyncadd %s693, 0
          %s702 = smul.addr %s28, 8
          %s703 = scalar_lea.hbm %s7, %s702
          %s705 = sshll.u32 %s696, 4
          %s706 = int_to_ptr.vmem [resolvable:$true] %s705
          %s707 = sshll.u32 %s703, 4
          %s708 = int_to_ptr.hbm [resolvable:$true] %s707
          %710 = dma.vmem_to_hbm [thread:$0]  %s706, 128, %s708, %s693
        $region72: #{tpu_custom_call.1} parent=47 // pred_fallthru
          _
      $region48: #{tpu_custom_call.1} parent=5 // pred_fallthru
        _
      %p711 = scmp.le.s32.totalorder 2, %s23
      // Predicated region
      $region73: #{tpu_custom_call.1} parent=5 // pred_check
        %p712 = pneg %p711
      $region74: #{tpu_custom_call.1} parent=5 // pred_check_branch
        %714 = sbr.rel (%p712) target = $region76
      $region75: #{tpu_custom_call.1} parent=5 // pred_region
        %s715 = ssub.s32 %s23, 2
        // Predicated region
        $region77: #{tpu_custom_call.1} parent=75 // pred_check
          %p716 = pneg %p214
        $region78: #{tpu_custom_call.1} parent=75 // pred_check_branch
          %718 = sbr.rel (%p716) target = $region80
        $region79: #{tpu_custom_call.1} parent=75 // pred_region
          %s719 = sand.u32 %s199, 1
          %s720 = scalar_lea.sflag [#allocation4], %s719
          %s721 = sand.u32 %s199, 1
          %s722 = smul.addr %s721, 8
          %s723 = scalar_lea.vmem [#allocation11], %s722
          %725 = dma.done %s720, 128
        $region80: #{tpu_custom_call.1} parent=75 // pred_fallthru
          _
      $region76: #{tpu_custom_call.1} parent=5 // pred_fallthru
        _
    $region6: #{tpu_custom_call.1} parent=1 // loop_footer
      %s27 = sadd.s32 1, %s23
    $region7: #{tpu_custom_call.1} parent=1 // loop_footer_branch
      %22 = sbr.rel target = $region3
    $region8: #{tpu_custom_call.1} parent=1 // loop_exit
      _
    %726 = vsyncpa [#allocation3], 1
    %s727 = scalar_lea.sflag [#allocation3], 1
    %728 = vsyncpa %s727, 1
    %729 = vsyncpa [#allocation6], 1
    %s730 = scalar_lea.sflag [#allocation6], 1
    %731 = vsyncpa %s730, 1
    %732 = vsyncpa [#allocation9], 1
    %733 = vsyncpa [#allocation4], 1
    %s734 = scalar_lea.sflag [#allocation4], 1
    %735 = vsyncpa %s734, 1

</llo_original>
